<compile_context>
chip_gen: v7x
topology: tpu7x:2x2x1
jax: 0.10.0
libtpu: 0.0.40
codegen_flags: <defaults>
</compile_context>

<pallas_src>
import jax
import jax.numpy as jnp
from jax.experimental import pallas as pl
from jax.experimental.pallas import tpu as pltpu

# MLP dims from the PyTorch module: 4 -> 128 -> 256 -> 512 -> 256 -> 128 -> 1
DIMS = [4, 128, 256, 512, 256, 128, 1]


def _round_up(n, m):
    return ((n + m - 1) // m) * m


def _dense(h, w_ref, b_ref):
    """MXU layer: cast activations to the weight dtype, accumulate in f32."""
    w = w_ref[...]
    return jnp.dot(h.astype(w.dtype), w,
                   preferred_element_type=jnp.float32) + b_ref[...]


def mlp_kernel(x_ref,
               w1, b1, w2, b2, w3, b3, w4, b4, w5, b5, w6t, b6,
               o_ref):
    # Layer 1 (4 -> 128): K=4 would waste a whole systolic pass on the MXU, so
    # run it on the VPU as four broadcast multiply-adds (all f32).
    x = x_ref[...]                      # (tile_m, 4) f32
    w1v = w1[...]                       # (4, 128) f32
    acc = x[:, 0:1] * w1v[0:1, :]
    for k in range(1, DIMS[0]):
        acc = acc + x[:, k:k + 1] * w1v[k:k + 1, :]
    h = jnp.maximum(acc + b1[...], 0.0)                       # ReLU

    # Layers 2-5 on the MXU (bf16 operands by default, f32 accumulation).
    h = jnp.maximum(_dense(h, w2, b2), 0.0)                   # ReLU
    h = jnp.maximum(_dense(h, w3, b3), 0.0)                   # ReLU
    h = jnp.maximum(_dense(h, w4, b4), 0.0)                   # ReLU
    h = jnp.tanh(_dense(h, w5, b5))                           # Tanh

    # Layer 6 (128 -> 1): VPU multiply by the transposed weight row + XLU lane
    # reduce.  Avoids an N=1 MXU pass and the old 128-column padded store; the
    # (tile_m, 1) block writes only 4 B/row back to HBM.
    col = jnp.sum(h * w6t[...], axis=1, keepdims=True) + b6[...]
    o_ref[...] = col.astype(o_ref.dtype)


def _default_tile_m(batch):
    """Large batch tiles (up to 1024 rows) to amortize MXU fill/drain and the
    per-grid-step pipeline overhead, while keeping >= ~4 grid steps when the
    batch allows so v7x's second TensorCore gets work and the pipeline has
    prefetch overlap.  Tiny demo batches run as a single small tile."""
    b8 = _round_up(batch, 8)
    if b8 <= 32:
        return b8
    tile = (b8 // 4) // 128 * 128
    return int(min(1024, max(128, tile)))


def mlp_forward(x, params, *, tile_m=None, weight_dtype=jnp.bfloat16):
    """x: (B, 4) f32.  params: list of (W, b) with W (in, out), b (1, out)."""
    B, in_dim = x.shape
    assert in_dim == DIMS[0]

    if tile_m is None:
        tile_m = _default_tile_m(B)
    tile_m = _round_up(tile_m, 8)

    # Zero-pad ragged batches up to a whole number of tiles; sliced back below.
    Bp = _round_up(B, tile_m)
    if Bp != B:
        x = jnp.pad(x, ((0, Bp - B), (0, 0)))
    grid = (Bp // tile_m,)

    n_layers = len(params)
    in_specs = [pl.BlockSpec((tile_m, DIMS[0]), lambda i: (i, 0))]
    flat_params = []
    for li, (w, b) in enumerate(params):
        if li == 0:
            w = w.astype(jnp.float32)          # VPU FMA path stays f32
        elif li == n_layers - 1:
            w = w.T.astype(jnp.float32)        # (1, 128) row for the lane reduce
        else:
            w = w.astype(weight_dtype)         # MXU operands (bf16 by default)
        b = b.astype(jnp.float32)
        for arr in (w, b):
            # Constant index_map: fetched once, VMEM-resident across batch tiles.
            in_specs.append(pl.BlockSpec(arr.shape, lambda i: (0, 0)))
            flat_params.append(arr)

    out_specs = pl.BlockSpec((tile_m, 1), lambda i: (i, 0))

    dense_flops = 2 * sum(i * o for i, o in zip(DIMS[:-1], DIMS[1:]))
    param_bytes = sum(int(a.size) * a.dtype.itemsize for a in flat_params)
    cost = pl.CostEstimate(
        flops=int(dense_flops) * int(Bp),
        transcendentals=int(Bp) * DIMS[5],      # tanh on the 128-wide layer
        bytes_accessed=param_bytes + int(x.size) * 4 + int(Bp) * 4,
    )

    out = pl.pallas_call(
        mlp_kernel,
        out_shape=jax.ShapeDtypeStruct((Bp, 1), jnp.float32),
        grid_spec=pltpu.PrefetchScalarGridSpec(
            num_scalar_prefetch=0,
            grid=grid,
            in_specs=in_specs,
            out_specs=out_specs,
        ),
        compiler_params=pltpu.CompilerParams(
            # Batch tiles are independent -> shards across the 2 TCs on v7x.
            dimension_semantics=("parallel",),
            # Headroom above the scoped-VMEM defaults (16 MiB v5e / 32 MiB
            # v6e & v7x) so 1024-row tiles never spill; well under physical.
            vmem_limit_bytes=48 * 1024 * 1024,
        ),
        cost_estimate=cost,
    )(x, *flat_params)

    return out[:B]          # (B, 1); padded rows discarded (4 B/row slice)


def init_params(key):
    """Deterministic init mirroring nn.Linear's U(-1/sqrt(fan_in), 1/sqrt(fan_in))."""
    params = []
    for fan_in, fan_out in zip(DIMS[:-1], DIMS[1:]):
        key, kw, kb = jax.random.split(key, 3)
        bound = 1.0 / jnp.sqrt(jnp.float32(fan_in))
        w = jax.random.uniform(kw, (fan_in, fan_out), jnp.float32, -bound, bound)
        b = jax.random.uniform(kb, (1, fan_out), jnp.float32, -bound, bound)
        params.append((w, b))
    return params


def mlp_reference(x, params, weight_dtype=jnp.float32):
    """Pure-JAX reference.  weight_dtype=bfloat16 mirrors the kernel's default
    MXU operand dtype on the hidden layers (f32 accumulation)."""
    h = x
    n = len(params)
    for li, (w, b) in enumerate(params):
        if 0 < li < n - 1 and weight_dtype != jnp.float32:
            h = jnp.dot(h.astype(weight_dtype), w.astype(weight_dtype),
                        preferred_element_type=jnp.float32) + b
        else:
            h = h @ w + b
        if li < 4:
            h = jax.nn.relu(h)
        elif li == 4:
            h = jnp.tanh(h)
    return h


if __name__ == "__main__":
    key = jax.random.PRNGKey(0)
    kx, kx2, kp = jax.random.split(key, 3)
    params = init_params(kp)

    # 1) f32 weights: exact forward-pass semantics of the PyTorch module.
    B = 16
    x = jax.random.normal(kx, (B, DIMS[0]), jnp.float32)
    out = jax.block_until_ready(mlp_forward(x, params, weight_dtype=jnp.float32))
    ref = mlp_reference(x, params, weight_dtype=jnp.float32)
    assert out.shape == (B, 1)
    assert jnp.allclose(out, ref, atol=1e-5, rtol=1e-5), "mismatch vs f32 reference"

    # 2) Default bf16 MXU path, ragged batch -> multi-tile grid (300 rows ->
    #    3 tiles of 128), compared against a matched-dtype reference.
    B2 = 300
    x2 = jax.random.normal(kx2, (B2, DIMS[0]), jnp.float32)
    out2 = jax.block_until_ready(mlp_forward(x2, params))
    ref2 = mlp_reference(x2, params, weight_dtype=jnp.bfloat16)
    assert out2.shape == (B2, 1)
    assert jnp.allclose(out2, ref2, atol=2e-3, rtol=2e-3), "mismatch vs bf16 reference"

    print("KERNEL_OK")
</pallas_src>

<mosaic_0001>
module attributes {stable_mosaic.version = 11 : i64} {
  func.func @mlp_kernel(%arg0: i32, %arg1: memref<16x4xf32, #tpu.memory_space<vmem>>, %arg2: memref<4x128xf32, #tpu.memory_space<vmem>>, %arg3: memref<1x128xf32, #tpu.memory_space<vmem>>, %arg4: memref<128x256xf32, #tpu.memory_space<vmem>>, %arg5: memref<1x256xf32, #tpu.memory_space<vmem>>, %arg6: memref<256x512xf32, #tpu.memory_space<vmem>>, %arg7: memref<1x512xf32, #tpu.memory_space<vmem>>, %arg8: memref<512x256xf32, #tpu.memory_space<vmem>>, %arg9: memref<1x256xf32, #tpu.memory_space<vmem>>, %arg10: memref<256x128xf32, #tpu.memory_space<vmem>>, %arg11: memref<1x128xf32, #tpu.memory_space<vmem>>, %arg12: memref<1x128xf32, #tpu.memory_space<vmem>>, %arg13: memref<1x1xf32, #tpu.memory_space<vmem>>, %arg14: memref<16x1xf32, #tpu.memory_space<vmem>>) attributes {dimension_semantics = [#tpu.dimension_semantics<parallel>], iteration_bounds = array<i64: 1>, scalar_prefetch = 0 : i64, scratch_operands = 0 : i64, tpu.core_type = #tpu.core_type<tc>, window_params = [{transform_indices = @transform_0, window_bounds = array<i64: 16, 4>}, {pipeline_mode = #tpu.pipeline_mode<synchronous>, transform_indices = @transform_1, window_bounds = array<i64: 4, 128>}, {pipeline_mode = #tpu.pipeline_mode<synchronous>, transform_indices = @transform_2, window_bounds = array<i64: 1, 128>}, {pipeline_mode = #tpu.pipeline_mode<synchronous>, transform_indices = @transform_3, window_bounds = array<i64: 128, 256>}, {pipeline_mode = #tpu.pipeline_mode<synchronous>, transform_indices = @transform_4, window_bounds = array<i64: 1, 256>}, {pipeline_mode = #tpu.pipeline_mode<synchronous>, transform_indices = @transform_5, window_bounds = array<i64: 256, 512>}, {pipeline_mode = #tpu.pipeline_mode<synchronous>, transform_indices = @transform_6, window_bounds = array<i64: 1, 512>}, {pipeline_mode = #tpu.pipeline_mode<synchronous>, transform_indices = @transform_7, window_bounds = array<i64: 512, 256>}, {pipeline_mode = #tpu.pipeline_mode<synchronous>, transform_indices = @transform_8, window_bounds = array<i64: 1, 256>}, {pipeline_mode = #tpu.pipeline_mode<synchronous>, transform_indices = @transform_9, window_bounds = array<i64: 256, 128>}, {pipeline_mode = #tpu.pipeline_mode<synchronous>, transform_indices = @transform_10, window_bounds = array<i64: 1, 128>}, {pipeline_mode = #tpu.pipeline_mode<synchronous>, transform_indices = @transform_11, window_bounds = array<i64: 1, 128>}, {pipeline_mode = #tpu.pipeline_mode<synchronous>, transform_indices = @transform_12, window_bounds = array<i64: 1, 1>}, {transform_indices = @transform_13, window_bounds = array<i64: 16, 1>}]} {
    %c0 = arith.constant 0 : index
    %c0_0 = arith.constant 0 : index
    %0 = vector.load %arg1[%c0, %c0_0] : memref<16x4xf32, #tpu.memory_space<vmem>>, vector<16x4xf32>
    %c0_1 = arith.constant 0 : index
    %c0_2 = arith.constant 0 : index
    %1 = vector.load %arg2[%c0_1, %c0_2] : memref<4x128xf32, #tpu.memory_space<vmem>>, vector<4x128xf32>
    %2 = vector.extract_strided_slice %0 {offsets = [0, 0], sizes = [16, 1], strides = [1, 1]} : vector<16x4xf32> to vector<16x1xf32>
    %3 = vector.extract_strided_slice %1 {offsets = [0, 0], sizes = [1, 128], strides = [1, 1]} : vector<4x128xf32> to vector<1x128xf32>
    %4 = vector.broadcast %2 : vector<16x1xf32> to vector<16x128xf32>
    %5 = vector.broadcast %3 : vector<1x128xf32> to vector<16x128xf32>
    %6 = arith.mulf %4, %5 : vector<16x128xf32>
    %7 = vector.extract_strided_slice %0 {offsets = [0, 1], sizes = [16, 1], strides = [1, 1]} : vector<16x4xf32> to vector<16x1xf32>
    %8 = vector.extract_strided_slice %1 {offsets = [1, 0], sizes = [1, 128], strides = [1, 1]} : vector<4x128xf32> to vector<1x128xf32>
    %9 = vector.broadcast %7 : vector<16x1xf32> to vector<16x128xf32>
    %10 = vector.broadcast %8 : vector<1x128xf32> to vector<16x128xf32>
    %11 = arith.mulf %9, %10 : vector<16x128xf32>
    %12 = arith.addf %6, %11 : vector<16x128xf32>
    %13 = vector.extract_strided_slice %0 {offsets = [0, 2], sizes = [16, 1], strides = [1, 1]} : vector<16x4xf32> to vector<16x1xf32>
    %14 = vector.extract_strided_slice %1 {offsets = [2, 0], sizes = [1, 128], strides = [1, 1]} : vector<4x128xf32> to vector<1x128xf32>
    %15 = vector.broadcast %13 : vector<16x1xf32> to vector<16x128xf32>
    %16 = vector.broadcast %14 : vector<1x128xf32> to vector<16x128xf32>
    %17 = arith.mulf %15, %16 : vector<16x128xf32>
    %18 = arith.addf %12, %17 : vector<16x128xf32>
    %19 = vector.extract_strided_slice %0 {offsets = [0, 3], sizes = [16, 1], strides = [1, 1]} : vector<16x4xf32> to vector<16x1xf32>
    %20 = vector.extract_strided_slice %1 {offsets = [3, 0], sizes = [1, 128], strides = [1, 1]} : vector<4x128xf32> to vector<1x128xf32>
    %21 = vector.broadcast %19 : vector<16x1xf32> to vector<16x128xf32>
    %22 = vector.broadcast %20 : vector<1x128xf32> to vector<16x128xf32>
    %23 = arith.mulf %21, %22 : vector<16x128xf32>
    %24 = arith.addf %18, %23 : vector<16x128xf32>
    %c0_3 = arith.constant 0 : index
    %c0_4 = arith.constant 0 : index
    %25 = vector.load %arg3[%c0_3, %c0_4] : memref<1x128xf32, #tpu.memory_space<vmem>>, vector<1x128xf32>
    %26 = vector.broadcast %25 : vector<1x128xf32> to vector<16x128xf32>
    %27 = arith.addf %24, %26 : vector<16x128xf32>
    %cst = arith.constant 0.000000e+00 : f32
    %28 = vector.broadcast %cst : f32 to vector<16x128xf32>
    %29 = arith.maximumf %27, %28 : vector<16x128xf32>
    %c0_5 = arith.constant 0 : index
    %c0_6 = arith.constant 0 : index
    %30 = vector.load %arg4[%c0_5, %c0_6] : memref<128x256xf32, #tpu.memory_space<vmem>>, vector<128x256xf32>
    %cst_7 = arith.constant dense<0.000000e+00> : vector<16x256xf32>
    %31 = tpu.matmul %29, %30, %cst_7 {dimension_numbers = #tpu.dot_dimension_numbers<[1], [0], [0], [1], [0, 0, 1, 1], [], []>} : vector<16x128xf32>, vector<128x256xf32>, vector<16x256xf32> -> vector<16x256xf32>
    %c0_8 = arith.constant 0 : index
    %c0_9 = arith.constant 0 : index
    %32 = vector.load %arg5[%c0_8, %c0_9] : memref<1x256xf32, #tpu.memory_space<vmem>>, vector<1x256xf32>
    %33 = vector.broadcast %32 : vector<1x256xf32> to vector<16x256xf32>
    %34 = arith.addf %31, %33 : vector<16x256xf32>
    %cst_10 = arith.constant 0.000000e+00 : f32
    %35 = vector.broadcast %cst_10 : f32 to vector<16x256xf32>
    %36 = arith.maximumf %34, %35 : vector<16x256xf32>
    %c0_11 = arith.constant 0 : index
    %c0_12 = arith.constant 0 : index
    %37 = vector.load %arg6[%c0_11, %c0_12] : memref<256x512xf32, #tpu.memory_space<vmem>>, vector<256x512xf32>
    %cst_13 = arith.constant dense<0.000000e+00> : vector<16x512xf32>
    %38 = tpu.matmul %36, %37, %cst_13 {dimension_numbers = #tpu.dot_dimension_numbers<[1], [0], [0], [1], [0, 0, 1, 1], [], []>} : vector<16x256xf32>, vector<256x512xf32>, vector<16x512xf32> -> vector<16x512xf32>
    %c0_14 = arith.constant 0 : index
    %c0_15 = arith.constant 0 : index
    %39 = vector.load %arg7[%c0_14, %c0_15] : memref<1x512xf32, #tpu.memory_space<vmem>>, vector<1x512xf32>
    %40 = vector.broadcast %39 : vector<1x512xf32> to vector<16x512xf32>
    %41 = arith.addf %38, %40 : vector<16x512xf32>
    %cst_16 = arith.constant 0.000000e+00 : f32
    %42 = vector.broadcast %cst_16 : f32 to vector<16x512xf32>
    %43 = arith.maximumf %41, %42 : vector<16x512xf32>
    %c0_17 = arith.constant 0 : index
    %c0_18 = arith.constant 0 : index
    %44 = vector.load %arg8[%c0_17, %c0_18] : memref<512x256xf32, #tpu.memory_space<vmem>>, vector<512x256xf32>
    %cst_19 = arith.constant dense<0.000000e+00> : vector<16x256xf32>
    %45 = tpu.matmul %43, %44, %cst_19 {dimension_numbers = #tpu.dot_dimension_numbers<[1], [0], [0], [1], [0, 0, 1, 1], [], []>} : vector<16x512xf32>, vector<512x256xf32>, vector<16x256xf32> -> vector<16x256xf32>
    %c0_20 = arith.constant 0 : index
    %c0_21 = arith.constant 0 : index
    %46 = vector.load %arg9[%c0_20, %c0_21] : memref<1x256xf32, #tpu.memory_space<vmem>>, vector<1x256xf32>
    %47 = vector.broadcast %46 : vector<1x256xf32> to vector<16x256xf32>
    %48 = arith.addf %45, %47 : vector<16x256xf32>
    %cst_22 = arith.constant 0.000000e+00 : f32
    %49 = vector.broadcast %cst_22 : f32 to vector<16x256xf32>
    %50 = arith.maximumf %48, %49 : vector<16x256xf32>
    %c0_23 = arith.constant 0 : index
    %c0_24 = arith.constant 0 : index
    %51 = vector.load %arg10[%c0_23, %c0_24] : memref<256x128xf32, #tpu.memory_space<vmem>>, vector<256x128xf32>
    %cst_25 = arith.constant dense<0.000000e+00> : vector<16x128xf32>
    %52 = tpu.matmul %50, %51, %cst_25 {dimension_numbers = #tpu.dot_dimension_numbers<[1], [0], [0], [1], [0, 0, 1, 1], [], []>} : vector<16x256xf32>, vector<256x128xf32>, vector<16x128xf32> -> vector<16x128xf32>
    %c0_26 = arith.constant 0 : index
    %c0_27 = arith.constant 0 : index
    %53 = vector.load %arg11[%c0_26, %c0_27] : memref<1x128xf32, #tpu.memory_space<vmem>>, vector<1x128xf32>
    %54 = vector.broadcast %53 : vector<1x128xf32> to vector<16x128xf32>
    %55 = arith.addf %52, %54 : vector<16x128xf32>
    %56 = math.tanh %55 : vector<16x128xf32>
    %c0_28 = arith.constant 0 : index
    %c0_29 = arith.constant 0 : index
    %57 = vector.load %arg12[%c0_28, %c0_29] : memref<1x128xf32, #tpu.memory_space<vmem>>, vector<1x128xf32>
    %58 = vector.broadcast %57 : vector<1x128xf32> to vector<16x128xf32>
    %59 = arith.mulf %56, %58 : vector<16x128xf32>
    %cst_30 = arith.constant dense<0.000000e+00> : vector<16xf32>
    %60 = vector.multi_reduction <add>, %59, %cst_30 [1] : vector<16x128xf32> to vector<16xf32>
    %61 = vector.shape_cast %60 : vector<16xf32> to vector<16x1xf32>
    %c0_31 = arith.constant 0 : index
    %c0_32 = arith.constant 0 : index
    %62 = vector.load %arg13[%c0_31, %c0_32] : memref<1x1xf32, #tpu.memory_space<vmem>>, vector<1x1xf32>
    %63 = vector.broadcast %62 : vector<1x1xf32> to vector<16x1xf32>
    %64 = arith.addf %61, %63 : vector<16x1xf32>
    %c0_33 = arith.constant 0 : index
    %c0_34 = arith.constant 0 : index
    %65 = vector.load %arg14[%c0_33, %c0_34] : memref<16x1xf32, #tpu.memory_space<vmem>>, vector<16x1xf32>
    tpu.vector_store %arg14[%c0_33, %c0_34], %64 {strides = array<i32>} : memref<16x1xf32, #tpu.memory_space<vmem>>, vector<16x1xf32>,
    return
  }
  func.func @transform_0(%arg0: i32) -> (i32, i32) {
    %c0_i32 = arith.constant 0 : i32
    %c0_i32_0 = arith.constant 0 : i32
    return %arg0, %c0_i32 : i32, i32
  }
  func.func @transform_1(%arg0: i32) -> (i32, i32) {
    %c0_i32 = arith.constant 0 : i32
    %c0_i32_0 = arith.constant 0 : i32
    %c0_i32_1 = arith.constant 0 : i32
    return %c0_i32, %c0_i32_0 : i32, i32
  }
  func.func @transform_2(%arg0: i32) -> (i32, i32) {
    %c0_i32 = arith.constant 0 : i32
    %c0_i32_0 = arith.constant 0 : i32
    %c0_i32_1 = arith.constant 0 : i32
    return %c0_i32, %c0_i32_0 : i32, i32
  }
  func.func @transform_3(%arg0: i32) -> (i32, i32) {
    %c0_i32 = arith.constant 0 : i32
    %c0_i32_0 = arith.constant 0 : i32
    %c0_i32_1 = arith.constant 0 : i32
    return %c0_i32, %c0_i32_0 : i32, i32
  }
  func.func @transform_4(%arg0: i32) -> (i32, i32) {
    %c0_i32 = arith.constant 0 : i32
    %c0_i32_0 = arith.constant 0 : i32
    %c0_i32_1 = arith.constant 0 : i32
    return %c0_i32, %c0_i32_0 : i32, i32
  }
  func.func @transform_5(%arg0: i32) -> (i32, i32) {
    %c0_i32 = arith.constant 0 : i32
    %c0_i32_0 = arith.constant 0 : i32
    %c0_i32_1 = arith.constant 0 : i32
    return %c0_i32, %c0_i32_0 : i32, i32
  }
  func.func @transform_6(%arg0: i32) -> (i32, i32) {
    %c0_i32 = arith.constant 0 : i32
    %c0_i32_0 = arith.constant 0 : i32
    %c0_i32_1 = arith.constant 0 : i32
    return %c0_i32, %c0_i32_0 : i32, i32
  }
  func.func @transform_7(%arg0: i32) -> (i32, i32) {
    %c0_i32 = arith.constant 0 : i32
    %c0_i32_0 = arith.constant 0 : i32
    %c0_i32_1 = arith.constant 0 : i32
    return %c0_i32, %c0_i32_0 : i32, i32
  }
  func.func @transform_8(%arg0: i32) -> (i32, i32) {
    %c0_i32 = arith.constant 0 : i32
    %c0_i32_0 = arith.constant 0 : i32
    %c0_i32_1 = arith.constant 0 : i32
    return %c0_i32, %c0_i32_0 : i32, i32
  }
  func.func @transform_9(%arg0: i32) -> (i32, i32) {
    %c0_i32 = arith.constant 0 : i32
    %c0_i32_0 = arith.constant 0 : i32
    %c0_i32_1 = arith.constant 0 : i32
    return %c0_i32, %c0_i32_0 : i32, i32
  }
  func.func @transform_10(%arg0: i32) -> (i32, i32) {
    %c0_i32 = arith.constant 0 : i32
    %c0_i32_0 = arith.constant 0 : i32
    %c0_i32_1 = arith.constant 0 : i32
    return %c0_i32, %c0_i32_0 : i32, i32
  }
  func.func @transform_11(%arg0: i32) -> (i32, i32) {
    %c0_i32 = arith.constant 0 : i32
    %c0_i32_0 = arith.constant 0 : i32
    %c0_i32_1 = arith.constant 0 : i32
    return %c0_i32, %c0_i32_0 : i32, i32
  }
  func.func @transform_12(%arg0: i32) -> (i32, i32) {
    %c0_i32 = arith.constant 0 : i32
    %c0_i32_0 = arith.constant 0 : i32
    %c0_i32_1 = arith.constant 0 : i32
    return %c0_i32, %c0_i32_0 : i32, i32
  }
  func.func @transform_13(%arg0: i32) -> (i32, i32) {
    %c0_i32 = arith.constant 0 : i32
    %c0_i32_0 = arith.constant 0 : i32
    return %arg0, %c0_i32 : i32, i32
  }
}

</mosaic_0001>

<llo_original>
// kernel: tpu_custom_call.1
$region0: #{tpu_custom_call.1}
  #allocation0 [shape = 'u32[]', space=smem, size = 0x4, offset = 0x4, fixed_abs, tag = 'smem constant byte address 0x4 - core index']
  #allocation1 [shape = 'u32[144,128]{1,0:T(1,128)}', space=vmem, size = 0x12000, scoped, tag = 'internal scratch']
  #allocation2 [shape = 'f32[1,1]{1,0:T(1,128)S(1)}', space=vmem, size = 0x200, scoped, tag = 'scoped memory for tpu_custom_call.1']
  %s0 = inlined_call_operand.vmem [shape: f32[16,4], index: 0, kind: input, shape index: {}]
  %s1 = inlined_call_operand.vmem [shape: f32[4,128], index: 1, kind: input, shape index: {}]
  %s2 = inlined_call_operand.vmem [shape: f32[1,128], index: 2, kind: input, shape index: {}]
  %s3 = inlined_call_operand.hbm [shape: f32[128,256], index: 3, kind: input, shape index: {}]
  %s4 = inlined_call_operand.vmem [shape: f32[1,256], index: 4, kind: input, shape index: {}]
  %s5 = inlined_call_operand.hbm [shape: f32[256,512], index: 5, kind: input, shape index: {}]
  %s6 = inlined_call_operand.vmem [shape: f32[1,512], index: 6, kind: input, shape index: {}]
  %s7 = inlined_call_operand.hbm [shape: f32[512,256], index: 7, kind: input, shape index: {}]
  %s8 = inlined_call_operand.vmem [shape: f32[1,256], index: 8, kind: input, shape index: {}]
  %s9 = inlined_call_operand.hbm [shape: f32[256,128], index: 9, kind: input, shape index: {}]
  %s10 = inlined_call_operand.vmem [shape: f32[1,128], index: 10, kind: input, shape index: {}]
  %s11 = inlined_call_operand.vmem [shape: f32[1,128], index: 11, kind: input, shape index: {}]
  %s12 = inlined_call_operand.<no memory space> [shape: f32[1,1], index: 12, kind: input, shape index: {}]
  %s13 = inlined_call_operand.vmem [shape: f32[16,1], index: 13, kind: output, shape index: {}]
  %s14 = sld [smem:[#allocation0]]
  $region78: #{tpu_custom_call.1} parent=0
    _
  %s16 = ssub.s32 1, %s14
  %s17 = scalar_select 0, %s16, %s14
  %v18 = vstv %s12
  %19 = vst [vmem:[#allocation2] sm:$0x1] %v18
  $region1: #{tpu_custom_call.1} parent=0
    #allocation3 [shape = 'u8[131072]{0}', space=vmem, size = 0x20000, scoped, tag = 'input window, operand 3, single buffered']
    #allocation4 [shape = 's32[1]{0}', space=sflag, size = 0x4, scoped, tag = 'scoped memory for tpu_custom_call.1']
    #allocation5 [shape = 'u8[524288]{0}', space=vmem, size = 0x80000, scoped, tag = 'input window, operand 5, single buffered']
    #allocation6 [shape = 's32[1]{0}', space=sflag, size = 0x4, scoped, tag = 'scoped memory for tpu_custom_call.1']
    #allocation7 [shape = 'u8[524288]{0}', space=vmem, size = 0x80000, scoped, tag = 'input window, operand 7, single buffered']
    #allocation8 [shape = 'u8[131072]{0}', space=vmem, size = 0x20000, scoped, tag = 'input window, operand 9, single buffered']
    #allocation9 [shape = 's32[1]{0}', space=sflag, size = 0x4, scoped, tag = 'scoped memory for tpu_custom_call.1']
    %20 = vsyncpa [#allocation4], 0
    %21 = vsyncpa [#allocation6], 0
    %22 = vsyncpa [#allocation9], 0
    // Predicated region
    $region2: #{tpu_custom_call.1} parent=1 // pred_check
      _
    $region3: #{tpu_custom_call.1} parent=1 // pred_check_branch
      %24 = sbr.rel (0) target = $region5
    $region4: #{tpu_custom_call.1} parent=1 // pred_region
      _
    $region5: #{tpu_custom_call.1} parent=1 // pred_fallthru
      _
    // Predicated region
    $region6: #{tpu_custom_call.1} parent=1 // pred_check
      _
    $region7: #{tpu_custom_call.1} parent=1 // pred_check_branch
      %26 = sbr.rel (0) target = $region9
    $region8: #{tpu_custom_call.1} parent=1 // pred_region
      _
    $region9: #{tpu_custom_call.1} parent=1 // pred_fallthru
      _
    // Predicated region
    $region10: #{tpu_custom_call.1} parent=1 // pred_check
      _
    $region11: #{tpu_custom_call.1} parent=1 // pred_check_branch
      %28 = sbr.rel (0) target = $region13
    $region12: #{tpu_custom_call.1} parent=1 // pred_region
      _
    $region13: #{tpu_custom_call.1} parent=1 // pred_fallthru
      _
    // Predicated region
    $region14: #{tpu_custom_call.1} parent=1 // pred_check
      _
    $region15: #{tpu_custom_call.1} parent=1 // pred_check_branch
      %30 = sbr.rel (0) target = $region17
    $region16: #{tpu_custom_call.1} parent=1 // pred_region
      %s32 = ssub.s32 4096, 4096
      %33 = vsyncadd [#allocation4], %s32
      %s34 = sshll.u32 [#allocation3], 4
      %s35 = int_to_ptr.vmem [resolvable:$true] %s34
      %40 = dma.hbm_to_vmem [thread:$0]  %s3, 4096, %s35, [#allocation4], 256, 256, 16
    $region17: #{tpu_custom_call.1} parent=1 // pred_fallthru
      _
    // Predicated region
    $region18: #{tpu_custom_call.1} parent=1 // pred_check
      _
    $region19: #{tpu_custom_call.1} parent=1 // pred_check_branch
      %42 = sbr.rel (0) target = $region21
    $region20: #{tpu_custom_call.1} parent=1 // pred_region
      _
    $region21: #{tpu_custom_call.1} parent=1 // pred_fallthru
      _
    // Predicated region
    $region22: #{tpu_custom_call.1} parent=1 // pred_check
      _
    $region23: #{tpu_custom_call.1} parent=1 // pred_check_branch
      %44 = sbr.rel (0) target = $region25
    $region24: #{tpu_custom_call.1} parent=1 // pred_region
      %s46 = ssub.s32 16384, 16384
      %47 = vsyncadd [#allocation6], %s46
      %s48 = sshll.u32 [#allocation5], 4
      %s49 = int_to_ptr.vmem [resolvable:$true] %s48
      %54 = dma.hbm_to_vmem [thread:$0]  %s5, 16384, %s49, [#allocation6], 512, 512, 32
    $region25: #{tpu_custom_call.1} parent=1 // pred_fallthru
      _
    // Predicated region
    $region26: #{tpu_custom_call.1} parent=1 // pred_check
      _
    $region27: #{tpu_custom_call.1} parent=1 // pred_check_branch
      %56 = sbr.rel (0) target = $region29
    $region28: #{tpu_custom_call.1} parent=1 // pred_region
      _
    $region29: #{tpu_custom_call.1} parent=1 // pred_fallthru
      _
    // Predicated region
    $region30: #{tpu_custom_call.1} parent=1 // pred_check
      _
    $region31: #{tpu_custom_call.1} parent=1 // pred_check_branch
      %58 = sbr.rel (0) target = $region33
    $region32: #{tpu_custom_call.1} parent=1 // pred_region
      %s60 = ssub.s32 16384, 16384
      %61 = vsyncadd [#allocation6], %s60
      %s62 = sshll.u32 [#allocation7], 4
      %s63 = int_to_ptr.vmem [resolvable:$true] %s62
      %68 = dma.hbm_to_vmem [thread:$0]  %s7, 16384, %s63, [#allocation6], 256, 256, 16
    $region33: #{tpu_custom_call.1} parent=1 // pred_fallthru
      _
    // Predicated region
    $region34: #{tpu_custom_call.1} parent=1 // pred_check
      _
    $region35: #{tpu_custom_call.1} parent=1 // pred_check_branch
      %70 = sbr.rel (0) target = $region37
    $region36: #{tpu_custom_call.1} parent=1 // pred_region
      _
    $region37: #{tpu_custom_call.1} parent=1 // pred_fallthru
      _
    // Predicated region
    $region38: #{tpu_custom_call.1} parent=1 // pred_check
      _
    $region39: #{tpu_custom_call.1} parent=1 // pred_check_branch
      %72 = sbr.rel (0) target = $region41
    $region40: #{tpu_custom_call.1} parent=1 // pred_region
      %s74 = ssub.s32 4096, 4096
      %75 = vsyncadd [#allocation9], %s74
      %s76 = sshll.u32 [#allocation8], 4
      %s77 = int_to_ptr.vmem [resolvable:$true] %s76
      %82 = dma.hbm_to_vmem [thread:$0]  %s9, 4096, %s77, [#allocation9], 128, 128, 8
    $region41: #{tpu_custom_call.1} parent=1 // pred_fallthru
      _
    // Predicated region
    $region42: #{tpu_custom_call.1} parent=1 // pred_check
      _
    $region43: #{tpu_custom_call.1} parent=1 // pred_check_branch
      %84 = sbr.rel (0) target = $region45
    $region44: #{tpu_custom_call.1} parent=1 // pred_region
      _
    $region45: #{tpu_custom_call.1} parent=1 // pred_fallthru
      _
    // Predicated region
    $region46: #{tpu_custom_call.1} parent=1 // pred_check
      _
    $region47: #{tpu_custom_call.1} parent=1 // pred_check_branch
      %86 = sbr.rel (0) target = $region49
    $region48: #{tpu_custom_call.1} parent=1 // pred_region
      _
    $region49: #{tpu_custom_call.1} parent=1 // pred_fallthru
      _
    // Predicated region
    $region50: #{tpu_custom_call.1} parent=1 // pred_check
      _
    $region51: #{tpu_custom_call.1} parent=1 // pred_check_branch
      %88 = sbr.rel (0) target = $region53
    $region52: #{tpu_custom_call.1} parent=1 // pred_region
      _
    $region53: #{tpu_custom_call.1} parent=1 // pred_fallthru
      _
    // Predicated region
    $region54: #{tpu_custom_call.1} parent=1 // pred_check
      _
    $region55: #{tpu_custom_call.1} parent=1 // pred_check_branch
      %90 = sbr.rel (0) target = $region57
    $region56: #{tpu_custom_call.1} parent=1 // pred_region
      %91 = dma.done [#allocation4], 4096
    $region57: #{tpu_custom_call.1} parent=1 // pred_fallthru
      _
    // Predicated region
    $region58: #{tpu_custom_call.1} parent=1 // pred_check
      _
    $region59: #{tpu_custom_call.1} parent=1 // pred_check_branch
      %93 = sbr.rel (0) target = $region61
    $region60: #{tpu_custom_call.1} parent=1 // pred_region
      %94 = dma.done [#allocation6], 16384
    $region61: #{tpu_custom_call.1} parent=1 // pred_fallthru
      _
    // Predicated region
    $region62: #{tpu_custom_call.1} parent=1 // pred_check
      _
    $region63: #{tpu_custom_call.1} parent=1 // pred_check_branch
      %96 = sbr.rel (0) target = $region65
    $region64: #{tpu_custom_call.1} parent=1 // pred_region
      %97 = dma.done [#allocation6], 16384
    $region65: #{tpu_custom_call.1} parent=1 // pred_fallthru
      _
    // Predicated region
    $region66: #{tpu_custom_call.1} parent=1 // pred_check
      _
    $region67: #{tpu_custom_call.1} parent=1 // pred_check_branch
      %99 = sbr.rel (0) target = $region69
    $region68: #{tpu_custom_call.1} parent=1 // pred_region
      %100 = dma.done [#allocation9], 4096
    $region69: #{tpu_custom_call.1} parent=1 // pred_fallthru
      _
    %v101 = vld [vmem:[%s0] sm:$0xff]
    %v102 = vld [vmem:[%s0 + $0x8] sm:$0xff]
    %v103 = vld [vmem:[%s1] sm:$0xf]
    %105 = vset.pattern.permute.xlu0 0
    %106 = vperm.xlu0 %105, %v101
    %v107 = vpop.permute.xlu0 %106
    %110 = vset.pattern.permute.xlu0 0
    %111 = vperm.xlu0 %110, %v102
    %v112 = vpop.permute.xlu0 %111
    %v114 = vlaneseq
    %v115 = vshrl.u32 %v114, 7
    %v116 = vsub.s32 0, %v115
    %v117 = vrot.slane %v103, %v116
    %v118 = vmul.f32 %v107, %v117
    %v119 = vmul.f32 %v112, %v117
    %120 = vset.pattern.permute.xlu0 1
    %121 = vperm.xlu0 %120, %v101
    %v122 = vpop.permute.xlu0 %121
    %124 = vset.pattern.permute.xlu0 1
    %125 = vperm.xlu0 %124, %v102
    %v126 = vpop.permute.xlu0 %125
    %v128 = vlaneseq
    %v129 = vshrl.u32 %v128, 7
    %v130 = vsub.s32 1, %v129
    %v131 = vrot.slane %v103, %v130
    %v132 = vmul.f32 %v122, %v131
    %v133 = vmul.f32 %v126, %v131
    %v134 = vadd.f32 %v118, %v132
    %v135 = vadd.f32 %v119, %v133
    %136 = vset.pattern.permute.xlu0 2
    %137 = vperm.xlu0 %136, %v101
    %v138 = vpop.permute.xlu0 %137
    %140 = vset.pattern.permute.xlu0 2
    %141 = vperm.xlu0 %140, %v102
    %v142 = vpop.permute.xlu0 %141
    %v144 = vlaneseq
    %v145 = vshrl.u32 %v144, 7
    %v146 = vsub.s32 2, %v145
    %v147 = vrot.slane %v103, %v146
    %v148 = vmul.f32 %v138, %v147
    %v149 = vmul.f32 %v142, %v147
    %v150 = vadd.f32 %v134, %v148
    %v151 = vadd.f32 %v135, %v149
    %152 = vset.pattern.permute.xlu0 3
    %153 = vperm.xlu0 %152, %v101
    %v154 = vpop.permute.xlu0 %153
    %156 = vset.pattern.permute.xlu0 3
    %157 = vperm.xlu0 %156, %v102
    %v158 = vpop.permute.xlu0 %157
    %v160 = vlaneseq
    %v161 = vshrl.u32 %v160, 7
    %v162 = vsub.s32 3, %v161
    %v163 = vrot.slane %v103, %v162
    %v164 = vmul.f32 %v154, %v163
    %v165 = vmul.f32 %v158, %v163
    %v166 = vadd.f32 %v150, %v164
    %v167 = vadd.f32 %v151, %v165
    %v168 = vld [vmem:[%s2] sm:$0x1]
    %v170 = vlaneseq
    %v171 = vshrl.u32 %v170, 7
    %v172 = vsub.s32 0, %v171
    %v173 = vrot.slane %v168, %v172
    %v175 = vadd.f32 %v166, %v173
    %v176 = vadd.f32 %v167, %v173
    %v177 = vmax.f32 %v175, 0.0
    %v178 = vmax.f32 %v176, 0.0
    %v179 = vld [vmem:[#allocation3] sm:$0xff]
    %v180 = vld [vmem:[#allocation3 + $0x8] sm:$0xff]
    %v181 = vld [vmem:[#allocation3 + $0x10] sm:$0xff]
    %v182 = vld [vmem:[#allocation3 + $0x18] sm:$0xff]
    %v183 = vld [vmem:[#allocation3 + $0x20] sm:$0xff]
    %v184 = vld [vmem:[#allocation3 + $0x28] sm:$0xff]
    %v185 = vld [vmem:[#allocation3 + $0x30] sm:$0xff]
    %v186 = vld [vmem:[#allocation3 + $0x38] sm:$0xff]
    %v187 = vld [vmem:[#allocation3 + $0x40] sm:$0xff]
    %v188 = vld [vmem:[#allocation3 + $0x48] sm:$0xff]
    %v189 = vld [vmem:[#allocation3 + $0x50] sm:$0xff]
    %v190 = vld [vmem:[#allocation3 + $0x58] sm:$0xff]
    %v191 = vld [vmem:[#allocation3 + $0x60] sm:$0xff]
    %v192 = vld [vmem:[#allocation3 + $0x68] sm:$0xff]
    %v193 = vld [vmem:[#allocation3 + $0x70] sm:$0xff]
    %v194 = vld [vmem:[#allocation3 + $0x78] sm:$0xff]
    %v195 = vld [vmem:[#allocation3 + $0x80] sm:$0xff]
    %v196 = vld [vmem:[#allocation3 + $0x88] sm:$0xff]
    %v197 = vld [vmem:[#allocation3 + $0x90] sm:$0xff]
    %v198 = vld [vmem:[#allocation3 + $0x98] sm:$0xff]
    %v199 = vld [vmem:[#allocation3 + $0xa0] sm:$0xff]
    %v200 = vld [vmem:[#allocation3 + $0xa8] sm:$0xff]
    %v201 = vld [vmem:[#allocation3 + $0xb0] sm:$0xff]
    %v202 = vld [vmem:[#allocation3 + $0xb8] sm:$0xff]
    %v203 = vld [vmem:[#allocation3 + $0xc0] sm:$0xff]
    %v204 = vld [vmem:[#allocation3 + $0xc8] sm:$0xff]
    %v205 = vld [vmem:[#allocation3 + $0xd0] sm:$0xff]
    %v206 = vld [vmem:[#allocation3 + $0xd8] sm:$0xff]
    %v207 = vld [vmem:[#allocation3 + $0xe0] sm:$0xff]
    %v208 = vld [vmem:[#allocation3 + $0xe8] sm:$0xff]
    %v209 = vld [vmem:[#allocation3 + $0xf0] sm:$0xff]
    %v210 = vld [vmem:[#allocation3 + $0xf8] sm:$0xff]
    %v211 = vld [vmem:[%s4] sm:$0x3]
    %v213 = vlaneseq
    %v214 = vshrl.u32 %v213, 7
    %v215 = vsub.s32 0, %v214
    %v216 = vrot.slane %v211, %v215
    %v217 = vlaneseq
    %v218 = vshrl.u32 %v217, 7
    %v219 = vsub.s32 1, %v218
    %v220 = vrot.slane %v211, %v219
    %223 = vmatprep.subr.mxu0 %v180
    %224 = vmatpush1.msra.mxu0 %v179
    %225 = vmatprep.subr.mxu0 %v182
    %226 = vmatpush1.msra.mxu0 %v181
    %227 = vmatprep.subr.mxu0 %v184
    %228 = vmatpush1.msra.mxu0 %v183
    %229 = vmatprep.subr.mxu0 %v186
    %230 = vmatpush1.msra.mxu0 %v185
    %231 = vmatprep.subr.mxu0 %v188
    %232 = vmatpush1.msra.mxu0 %v187
    %233 = vmatprep.subr.mxu0 %v190
    %234 = vmatpush1.msra.mxu0 %v189
    %235 = vmatprep.subr.mxu0 %v192
    %236 = vmatpush1.msra.mxu0 %v191
    %237 = vmatprep.subr.mxu0 %v194
    %238 = vmatpush1.msra.mxu0 %v193
    %239 = vmatprep.subr.mxu0 %v196
    %240 = vmatpush1.msra.mxu0 %v195
    %241 = vmatprep.subr.mxu0 %v198
    %242 = vmatpush1.msra.mxu0 %v197
    %243 = vmatprep.subr.mxu0 %v200
    %244 = vmatpush1.msra.mxu0 %v199
    %245 = vmatprep.subr.mxu0 %v202
    %246 = vmatpush1.msra.mxu0 %v201
    %247 = vmatprep.subr.mxu0 %v204
    %248 = vmatpush1.msra.mxu0 %v203
    %249 = vmatprep.subr.mxu0 %v206
    %250 = vmatpush1.msra.mxu0 %v205
    %251 = vmatprep.subr.mxu0 %v208
    %252 = vmatpush1.msra.mxu0 %v207
    %253 = vmatprep.subr.mxu0 %v210
    %254 = vmatpush1.msra.mxu0 %v209
    %255 = vmatprep.subr.mxu0 0.0
    %256 = vmatpush1.msra.mxu0 0.0
    %257 = vmatprep.subr.mxu0 0.0
    %258 = vmatpush1.msra.mxu0 0.0
    %259 = vmatprep.subr.mxu0 0.0
    %260 = vmatpush1.msra.mxu0 0.0
    %261 = vmatprep.subr.mxu0 0.0
    %262 = vmatpush1.msra.mxu0 0.0
    %263 = vmatprep.subr.mxu0 0.0
    %264 = vmatpush1.msra.mxu0 0.0
    %265 = vmatprep.subr.mxu0 0.0
    %266 = vmatpush1.msra.mxu0 0.0
    %267 = vmatprep.subr.mxu0 0.0
    %268 = vmatpush1.msra.mxu0 0.0
    %269 = vmatprep.subr.mxu0 0.0
    %270 = vmatpush1.msra.mxu0 0.0
    %271 = vmatprep.subr.mxu0 0.0
    %272 = vmatpush1.msra.mxu0 0.0
    %273 = vmatprep.subr.mxu0 0.0
    %274 = vmatpush1.msra.mxu0 0.0
    %275 = vmatprep.subr.mxu0 0.0
    %276 = vmatpush1.msra.mxu0 0.0
    %277 = vmatprep.subr.mxu0 0.0
    %278 = vmatpush1.msra.mxu0 0.0
    %279 = vmatprep.subr.mxu0 0.0
    %280 = vmatpush1.msra.mxu0 0.0
    %281 = vmatprep.subr.mxu0 0.0
    %282 = vmatpush1.msra.mxu0 0.0
    %283 = vmatprep.subr.mxu0 0.0
    %284 = vmatpush1.msra.mxu0 0.0
    %285 = vmatprep.subr.mxu0 0.0
    %286 = vmatpush1.msra.mxu0 0.0
    %287 = vmatprep.mubr.f32.mxu0 0.0
    %288 = vmatmul.mubr.f32.gmra.mrb[0].mxu0 %v177
    %v289 = vpop.f32.mrb[0].mxu0
    %v290 = vadd.f32 %v216, %v289
    %v291 = vpop.f32.mrb[0].mxu0
    %v292 = vadd.f32 %v220, %v291
    %293 = vmatprep.mubr.f32.mxu0 0.0
    %294 = vmatmul.mubr.f32.gmra.mrb[0].mxu0 %v178
    %v295 = vpop.f32.mrb[0].mxu0
    %v296 = vadd.f32 %v216, %v295
    %v297 = vpop.f32.mrb[0].mxu0
    %v298 = vadd.f32 %v220, %v297
    %299 = vdwg.mxu0
    %v300 = vmax.f32 %v290, 0.0
    %v301 = vmax.f32 %v292, 0.0
    %v302 = vmax.f32 %v296, 0.0
    %v303 = vmax.f32 %v298, 0.0
    %v304 = vld [vmem:[#allocation5] sm:$0xff]
    %v305 = vld [vmem:[#allocation5 + $0x8] sm:$0xff]
    %v306 = vld [vmem:[#allocation5 + $0x10] sm:$0xff]
    %v307 = vld [vmem:[#allocation5 + $0x18] sm:$0xff]
    %v308 = vld [vmem:[#allocation5 + $0x20] sm:$0xff]
    %v309 = vld [vmem:[#allocation5 + $0x28] sm:$0xff]
    %v310 = vld [vmem:[#allocation5 + $0x30] sm:$0xff]
    %v311 = vld [vmem:[#allocation5 + $0x38] sm:$0xff]
    %v312 = vld [vmem:[#allocation5 + $0x40] sm:$0xff]
    %v313 = vld [vmem:[#allocation5 + $0x48] sm:$0xff]
    %v314 = vld [vmem:[#allocation5 + $0x50] sm:$0xff]
    %v315 = vld [vmem:[#allocation5 + $0x58] sm:$0xff]
    %v316 = vld [vmem:[#allocation5 + $0x60] sm:$0xff]
    %v317 = vld [vmem:[#allocation5 + $0x68] sm:$0xff]
    %v318 = vld [vmem:[#allocation5 + $0x70] sm:$0xff]
    %v319 = vld [vmem:[#allocation5 + $0x78] sm:$0xff]
    %v320 = vld [vmem:[#allocation5 + $0x80] sm:$0xff]
    %v321 = vld [vmem:[#allocation5 + $0x88] sm:$0xff]
    %v322 = vld [vmem:[#allocation5 + $0x90] sm:$0xff]
    %v323 = vld [vmem:[#allocation5 + $0x98] sm:$0xff]
    %v324 = vld [vmem:[#allocation5 + $0xa0] sm:$0xff]
    %v325 = vld [vmem:[#allocation5 + $0xa8] sm:$0xff]
    %v326 = vld [vmem:[#allocation5 + $0xb0] sm:$0xff]
    %v327 = vld [vmem:[#allocation5 + $0xb8] sm:$0xff]
    %v328 = vld [vmem:[#allocation5 + $0xc0] sm:$0xff]
    %v329 = vld [vmem:[#allocation5 + $0xc8] sm:$0xff]
    %v330 = vld [vmem:[#allocation5 + $0xd0] sm:$0xff]
    %v331 = vld [vmem:[#allocation5 + $0xd8] sm:$0xff]
    %v332 = vld [vmem:[#allocation5 + $0xe0] sm:$0xff]
    %v333 = vld [vmem:[#allocation5 + $0xe8] sm:$0xff]
    %v334 = vld [vmem:[#allocation5 + $0xf0] sm:$0xff]
    %v335 = vld [vmem:[#allocation5 + $0xf8] sm:$0xff]
    %v336 = vld [vmem:[#allocation5 + $0x100] sm:$0xff]
    %v337 = vld [vmem:[#allocation5 + $0x108] sm:$0xff]
    %v338 = vld [vmem:[#allocation5 + $0x110] sm:$0xff]
    %v339 = vld [vmem:[#allocation5 + $0x118] sm:$0xff]
    %v340 = vld [vmem:[#allocation5 + $0x120] sm:$0xff]
    %v341 = vld [vmem:[#allocation5 + $0x128] sm:$0xff]
    %v342 = vld [vmem:[#allocation5 + $0x130] sm:$0xff]
    %v343 = vld [vmem:[#allocation5 + $0x138] sm:$0xff]
    %v344 = vld [vmem:[#allocation5 + $0x140] sm:$0xff]
    %v345 = vld [vmem:[#allocation5 + $0x148] sm:$0xff]
    %v346 = vld [vmem:[#allocation5 + $0x150] sm:$0xff]
    %v347 = vld [vmem:[#allocation5 + $0x158] sm:$0xff]
    %v348 = vld [vmem:[#allocation5 + $0x160] sm:$0xff]
    %v349 = vld [vmem:[#allocation5 + $0x168] sm:$0xff]
    %v350 = vld [vmem:[#allocation5 + $0x170] sm:$0xff]
    %v351 = vld [vmem:[#allocation5 + $0x178] sm:$0xff]
    %v352 = vld [vmem:[#allocation5 + $0x180] sm:$0xff]
    %v353 = vld [vmem:[#allocation5 + $0x188] sm:$0xff]
    %v354 = vld [vmem:[#allocation5 + $0x190] sm:$0xff]
    %v355 = vld [vmem:[#allocation5 + $0x198] sm:$0xff]
    %v356 = vld [vmem:[#allocation5 + $0x1a0] sm:$0xff]
    %v357 = vld [vmem:[#allocation5 + $0x1a8] sm:$0xff]
    %v358 = vld [vmem:[#allocation5 + $0x1b0] sm:$0xff]
    %v359 = vld [vmem:[#allocation5 + $0x1b8] sm:$0xff]
    %v360 = vld [vmem:[#allocation5 + $0x1c0] sm:$0xff]
    %v361 = vld [vmem:[#allocation5 + $0x1c8] sm:$0xff]
    %v362 = vld [vmem:[#allocation5 + $0x1d0] sm:$0xff]
    %v363 = vld [vmem:[#allocation5 + $0x1d8] sm:$0xff]
    %v364 = vld [vmem:[#allocation5 + $0x1e0] sm:$0xff]
    %v365 = vld [vmem:[#allocation5 + $0x1e8] sm:$0xff]
    %v366 = vld [vmem:[#allocation5 + $0x1f0] sm:$0xff]
    %v367 = vld [vmem:[#allocation5 + $0x1f8] sm:$0xff]
    %v368 = vld [vmem:[#allocation5 + $0x200] sm:$0xff]
    %v369 = vld [vmem:[#allocation5 + $0x208] sm:$0xff]
    %v370 = vld [vmem:[#allocation5 + $0x210] sm:$0xff]
    %v371 = vld [vmem:[#allocation5 + $0x218] sm:$0xff]
    %v372 = vld [vmem:[#allocation5 + $0x220] sm:$0xff]
    %v373 = vld [vmem:[#allocation5 + $0x228] sm:$0xff]
    %v374 = vld [vmem:[#allocation5 + $0x230] sm:$0xff]
    %v375 = vld [vmem:[#allocation5 + $0x238] sm:$0xff]
    %v376 = vld [vmem:[#allocation5 + $0x240] sm:$0xff]
    %v377 = vld [vmem:[#allocation5 + $0x248] sm:$0xff]
    %v378 = vld [vmem:[#allocation5 + $0x250] sm:$0xff]
    %v379 = vld [vmem:[#allocation5 + $0x258] sm:$0xff]
    %v380 = vld [vmem:[#allocation5 + $0x260] sm:$0xff]
    %v381 = vld [vmem:[#allocation5 + $0x268] sm:$0xff]
    %v382 = vld [vmem:[#allocation5 + $0x270] sm:$0xff]
    %v383 = vld [vmem:[#allocation5 + $0x278] sm:$0xff]
    %v384 = vld [vmem:[#allocation5 + $0x280] sm:$0xff]
    %v385 = vld [vmem:[#allocation5 + $0x288] sm:$0xff]
    %v386 = vld [vmem:[#allocation5 + $0x290] sm:$0xff]
    %v387 = vld [vmem:[#allocation5 + $0x298] sm:$0xff]
    %v388 = vld [vmem:[#allocation5 + $0x2a0] sm:$0xff]
    %v389 = vld [vmem:[#allocation5 + $0x2a8] sm:$0xff]
    %v390 = vld [vmem:[#allocation5 + $0x2b0] sm:$0xff]
    %v391 = vld [vmem:[#allocation5 + $0x2b8] sm:$0xff]
    %v392 = vld [vmem:[#allocation5 + $0x2c0] sm:$0xff]
    %v393 = vld [vmem:[#allocation5 + $0x2c8] sm:$0xff]
    %v394 = vld [vmem:[#allocation5 + $0x2d0] sm:$0xff]
    %v395 = vld [vmem:[#allocation5 + $0x2d8] sm:$0xff]
    %v396 = vld [vmem:[#allocation5 + $0x2e0] sm:$0xff]
    %v397 = vld [vmem:[#allocation5 + $0x2e8] sm:$0xff]
    %v398 = vld [vmem:[#allocation5 + $0x2f0] sm:$0xff]
    %v399 = vld [vmem:[#allocation5 + $0x2f8] sm:$0xff]
    %v400 = vld [vmem:[#allocation5 + $0x300] sm:$0xff]
    %v401 = vld [vmem:[#allocation5 + $0x308] sm:$0xff]
    %v402 = vld [vmem:[#allocation5 + $0x310] sm:$0xff]
    %v403 = vld [vmem:[#allocation5 + $0x318] sm:$0xff]
    %v404 = vld [vmem:[#allocation5 + $0x320] sm:$0xff]
    %v405 = vld [vmem:[#allocation5 + $0x328] sm:$0xff]
    %v406 = vld [vmem:[#allocation5 + $0x330] sm:$0xff]
    %v407 = vld [vmem:[#allocation5 + $0x338] sm:$0xff]
    %v408 = vld [vmem:[#allocation5 + $0x340] sm:$0xff]
    %v409 = vld [vmem:[#allocation5 + $0x348] sm:$0xff]
    %v410 = vld [vmem:[#allocation5 + $0x350] sm:$0xff]
    %v411 = vld [vmem:[#allocation5 + $0x358] sm:$0xff]
    %v412 = vld [vmem:[#allocation5 + $0x360] sm:$0xff]
    %v413 = vld [vmem:[#allocation5 + $0x368] sm:$0xff]
    %v414 = vld [vmem:[#allocation5 + $0x370] sm:$0xff]
    %v415 = vld [vmem:[#allocation5 + $0x378] sm:$0xff]
    %v416 = vld [vmem:[#allocation5 + $0x380] sm:$0xff]
    %v417 = vld [vmem:[#allocation5 + $0x388] sm:$0xff]
    %v418 = vld [vmem:[#allocation5 + $0x390] sm:$0xff]
    %v419 = vld [vmem:[#allocation5 + $0x398] sm:$0xff]
    %v420 = vld [vmem:[#allocation5 + $0x3a0] sm:$0xff]
    %v421 = vld [vmem:[#allocation5 + $0x3a8] sm:$0xff]
    %v422 = vld [vmem:[#allocation5 + $0x3b0] sm:$0xff]
    %v423 = vld [vmem:[#allocation5 + $0x3b8] sm:$0xff]
    %v424 = vld [vmem:[#allocation5 + $0x3c0] sm:$0xff]
    %v425 = vld [vmem:[#allocation5 + $0x3c8] sm:$0xff]
    %v426 = vld [vmem:[#allocation5 + $0x3d0] sm:$0xff]
    %v427 = vld [vmem:[#allocation5 + $0x3d8] sm:$0xff]
    %v428 = vld [vmem:[#allocation5 + $0x3e0] sm:$0xff]
    %v429 = vld [vmem:[#allocation5 + $0x3e8] sm:$0xff]
    %v430 = vld [vmem:[#allocation5 + $0x3f0] sm:$0xff]
    %v431 = vld [vmem:[#allocation5 + $0x3f8] sm:$0xff]
    %v432 = vld [vmem:[%s6] sm:$0xf]
    %v434 = vlaneseq
    %v435 = vshrl.u32 %v434, 7
    %v436 = vsub.s32 0, %v435
    %v437 = vrot.slane %v432, %v436
    %v438 = vlaneseq
    %v439 = vshrl.u32 %v438, 7
    %v440 = vsub.s32 1, %v439
    %v441 = vrot.slane %v432, %v440
    %v442 = vlaneseq
    %v443 = vshrl.u32 %v442, 7
    %v444 = vsub.s32 2, %v443
    %v445 = vrot.slane %v432, %v444
    %v446 = vlaneseq
    %v447 = vshrl.u32 %v446, 7
    %v448 = vsub.s32 3, %v447
    %v449 = vrot.slane %v432, %v448
    %454 = vmatprep.subr.mxu0 %v305
    %455 = vmatpush1.msra.mxu0 %v304
    %456 = vmatprep.subr.mxu0 %v309
    %457 = vmatpush1.msra.mxu0 %v308
    %458 = vmatprep.subr.mxu0 %v313
    %459 = vmatpush1.msra.mxu0 %v312
    %460 = vmatprep.subr.mxu0 %v317
    %461 = vmatpush1.msra.mxu0 %v316
    %462 = vmatprep.subr.mxu0 %v321
    %463 = vmatpush1.msra.mxu0 %v320
    %464 = vmatprep.subr.mxu0 %v325
    %465 = vmatpush1.msra.mxu0 %v324
    %466 = vmatprep.subr.mxu0 %v329
    %467 = vmatpush1.msra.mxu0 %v328
    %468 = vmatprep.subr.mxu0 %v333
    %469 = vmatpush1.msra.mxu0 %v332
    %470 = vmatprep.subr.mxu0 %v337
    %471 = vmatpush1.msra.mxu0 %v336
    %472 = vmatprep.subr.mxu0 %v341
    %473 = vmatpush1.msra.mxu0 %v340
    %474 = vmatprep.subr.mxu0 %v345
    %475 = vmatpush1.msra.mxu0 %v344
    %476 = vmatprep.subr.mxu0 %v349
    %477 = vmatpush1.msra.mxu0 %v348
    %478 = vmatprep.subr.mxu0 %v353
    %479 = vmatpush1.msra.mxu0 %v352
    %480 = vmatprep.subr.mxu0 %v357
    %481 = vmatpush1.msra.mxu0 %v356
    %482 = vmatprep.subr.mxu0 %v361
    %483 = vmatpush1.msra.mxu0 %v360
    %484 = vmatprep.subr.mxu0 %v365
    %485 = vmatpush1.msra.mxu0 %v364
    %486 = vmatprep.subr.mxu0 %v369
    %487 = vmatpush1.msra.mxu0 %v368
    %488 = vmatprep.subr.mxu0 %v373
    %489 = vmatpush1.msra.mxu0 %v372
    %490 = vmatprep.subr.mxu0 %v377
    %491 = vmatpush1.msra.mxu0 %v376
    %492 = vmatprep.subr.mxu0 %v381
    %493 = vmatpush1.msra.mxu0 %v380
    %494 = vmatprep.subr.mxu0 %v385
    %495 = vmatpush1.msra.mxu0 %v384
    %496 = vmatprep.subr.mxu0 %v389
    %497 = vmatpush1.msra.mxu0 %v388
    %498 = vmatprep.subr.mxu0 %v393
    %499 = vmatpush1.msra.mxu0 %v392
    %500 = vmatprep.subr.mxu0 %v397
    %501 = vmatpush1.msra.mxu0 %v396
    %502 = vmatprep.subr.mxu0 %v401
    %503 = vmatpush1.msra.mxu0 %v400
    %504 = vmatprep.subr.mxu0 %v405
    %505 = vmatpush1.msra.mxu0 %v404
    %506 = vmatprep.subr.mxu0 %v409
    %507 = vmatpush1.msra.mxu0 %v408
    %508 = vmatprep.subr.mxu0 %v413
    %509 = vmatpush1.msra.mxu0 %v412
    %510 = vmatprep.subr.mxu0 %v417
    %511 = vmatpush1.msra.mxu0 %v416
    %512 = vmatprep.subr.mxu0 %v421
    %513 = vmatpush1.msra.mxu0 %v420
    %514 = vmatprep.subr.mxu0 %v425
    %515 = vmatpush1.msra.mxu0 %v424
    %516 = vmatprep.subr.mxu0 %v429
    %517 = vmatpush1.msra.mxu0 %v428
    %518 = vmatprep.mubr.f32.mxu0 %v301
    %519 = vmatmul.mubr.f32.gmra.mrb[0].mxu0 %v300
    %v520 = vpop.f32.mrb[0].mxu0
    %v521 = vadd.f32 %v437, %v520
    %v522 = vpop.f32.mrb[0].mxu0
    %v523 = vadd.f32 %v441, %v522
    %524 = vmatprep.mubr.f32.mxu0 %v303
    %525 = vmatmul.mubr.f32.gmra.mrb[0].mxu0 %v302
    %v526 = vpop.f32.mrb[0].mxu0
    %v527 = vadd.f32 %v437, %v526
    %v528 = vpop.f32.mrb[0].mxu0
    %v529 = vadd.f32 %v441, %v528
    %530 = vdwg.mxu0
    %531 = vmatprep.subr.mxu0 %v307
    %532 = vmatpush1.msra.mxu0 %v306
    %533 = vmatprep.subr.mxu0 %v311
    %534 = vmatpush1.msra.mxu0 %v310
    %535 = vmatprep.subr.mxu0 %v315
    %536 = vmatpush1.msra.mxu0 %v314
    %537 = vmatprep.subr.mxu0 %v319
    %538 = vmatpush1.msra.mxu0 %v318
    %539 = vmatprep.subr.mxu0 %v323
    %540 = vmatpush1.msra.mxu0 %v322
    %541 = vmatprep.subr.mxu0 %v327
    %542 = vmatpush1.msra.mxu0 %v326
    %543 = vmatprep.subr.mxu0 %v331
    %544 = vmatpush1.msra.mxu0 %v330
    %545 = vmatprep.subr.mxu0 %v335
    %546 = vmatpush1.msra.mxu0 %v334
    %547 = vmatprep.subr.mxu0 %v339
    %548 = vmatpush1.msra.mxu0 %v338
    %549 = vmatprep.subr.mxu0 %v343
    %550 = vmatpush1.msra.mxu0 %v342
    %551 = vmatprep.subr.mxu0 %v347
    %552 = vmatpush1.msra.mxu0 %v346
    %553 = vmatprep.subr.mxu0 %v351
    %554 = vmatpush1.msra.mxu0 %v350
    %555 = vmatprep.subr.mxu0 %v355
    %556 = vmatpush1.msra.mxu0 %v354
    %557 = vmatprep.subr.mxu0 %v359
    %558 = vmatpush1.msra.mxu0 %v358
    %559 = vmatprep.subr.mxu0 %v363
    %560 = vmatpush1.msra.mxu0 %v362
    %561 = vmatprep.subr.mxu0 %v367
    %562 = vmatpush1.msra.mxu0 %v366
    %563 = vmatprep.subr.mxu0 %v371
    %564 = vmatpush1.msra.mxu0 %v370
    %565 = vmatprep.subr.mxu0 %v375
    %566 = vmatpush1.msra.mxu0 %v374
    %567 = vmatprep.subr.mxu0 %v379
    %568 = vmatpush1.msra.mxu0 %v378
    %569 = vmatprep.subr.mxu0 %v383
    %570 = vmatpush1.msra.mxu0 %v382
    %571 = vmatprep.subr.mxu0 %v387
    %572 = vmatpush1.msra.mxu0 %v386
    %573 = vmatprep.subr.mxu0 %v391
    %574 = vmatpush1.msra.mxu0 %v390
    %575 = vmatprep.subr.mxu0 %v395
    %576 = vmatpush1.msra.mxu0 %v394
    %577 = vmatprep.subr.mxu0 %v399
    %578 = vmatpush1.msra.mxu0 %v398
    %579 = vmatprep.subr.mxu0 %v403
    %580 = vmatpush1.msra.mxu0 %v402
    %581 = vmatprep.subr.mxu0 %v407
    %582 = vmatpush1.msra.mxu0 %v406
    %583 = vmatprep.subr.mxu0 %v411
    %584 = vmatpush1.msra.mxu0 %v410
    %585 = vmatprep.subr.mxu0 %v415
    %586 = vmatpush1.msra.mxu0 %v414
    %587 = vmatprep.subr.mxu0 %v419
    %588 = vmatpush1.msra.mxu0 %v418
    %589 = vmatprep.subr.mxu0 %v423
    %590 = vmatpush1.msra.mxu0 %v422
    %591 = vmatprep.subr.mxu0 %v427
    %592 = vmatpush1.msra.mxu0 %v426
    %593 = vmatprep.subr.mxu0 %v431
    %594 = vmatpush1.msra.mxu0 %v430
    %595 = vmatprep.mubr.f32.mxu0 %v301
    %596 = vmatmul.mubr.f32.gmra.mrb[0].mxu0 %v300
    %v597 = vpop.f32.mrb[0].mxu0
    %v598 = vadd.f32 %v445, %v597
    %v599 = vpop.f32.mrb[0].mxu0
    %v600 = vadd.f32 %v449, %v599
    %601 = vmatprep.mubr.f32.mxu0 %v303
    %602 = vmatmul.mubr.f32.gmra.mrb[0].mxu0 %v302
    %v603 = vpop.f32.mrb[0].mxu0
    %v604 = vadd.f32 %v445, %v603
    %v605 = vpop.f32.mrb[0].mxu0
    %v606 = vadd.f32 %v449, %v605
    %607 = vdwg.mxu0
    %v608 = vmax.f32 %v521, 0.0
    %v609 = vmax.f32 %v523, 0.0
    %v610 = vmax.f32 %v598, 0.0
    %v611 = vmax.f32 %v600, 0.0
    %v612 = vmax.f32 %v527, 0.0
    %v613 = vmax.f32 %v529, 0.0
    %v614 = vmax.f32 %v604, 0.0
    %v615 = vmax.f32 %v606, 0.0
    %v616 = vld [vmem:[#allocation7] sm:$0xff]
    %v617 = vld [vmem:[#allocation7 + $0x8] sm:$0xff]
    %v618 = vld [vmem:[#allocation7 + $0x10] sm:$0xff]
    %v619 = vld [vmem:[#allocation7 + $0x18] sm:$0xff]
    %v620 = vld [vmem:[#allocation7 + $0x20] sm:$0xff]
    %v621 = vld [vmem:[#allocation7 + $0x28] sm:$0xff]
    %v622 = vld [vmem:[#allocation7 + $0x30] sm:$0xff]
    %v623 = vld [vmem:[#allocation7 + $0x38] sm:$0xff]
    %v624 = vld [vmem:[#allocation7 + $0x40] sm:$0xff]
    %v625 = vld [vmem:[#allocation7 + $0x48] sm:$0xff]
    %v626 = vld [vmem:[#allocation7 + $0x50] sm:$0xff]
    %v627 = vld [vmem:[#allocation7 + $0x58] sm:$0xff]
    %v628 = vld [vmem:[#allocation7 + $0x60] sm:$0xff]
    %v629 = vld [vmem:[#allocation7 + $0x68] sm:$0xff]
    %v630 = vld [vmem:[#allocation7 + $0x70] sm:$0xff]
    %v631 = vld [vmem:[#allocation7 + $0x78] sm:$0xff]
    %v632 = vld [vmem:[#allocation7 + $0x80] sm:$0xff]
    %v633 = vld [vmem:[#allocation7 + $0x88] sm:$0xff]
    %v634 = vld [vmem:[#allocation7 + $0x90] sm:$0xff]
    %v635 = vld [vmem:[#allocation7 + $0x98] sm:$0xff]
    %v636 = vld [vmem:[#allocation7 + $0xa0] sm:$0xff]
    %v637 = vld [vmem:[#allocation7 + $0xa8] sm:$0xff]
    %v638 = vld [vmem:[#allocation7 + $0xb0] sm:$0xff]
    %v639 = vld [vmem:[#allocation7 + $0xb8] sm:$0xff]
    %v640 = vld [vmem:[#allocation7 + $0xc0] sm:$0xff]
    %v641 = vld [vmem:[#allocation7 + $0xc8] sm:$0xff]
    %v642 = vld [vmem:[#allocation7 + $0xd0] sm:$0xff]
    %v643 = vld [vmem:[#allocation7 + $0xd8] sm:$0xff]
    %v644 = vld [vmem:[#allocation7 + $0xe0] sm:$0xff]
    %v645 = vld [vmem:[#allocation7 + $0xe8] sm:$0xff]
    %v646 = vld [vmem:[#allocation7 + $0xf0] sm:$0xff]
    %v647 = vld [vmem:[#allocation7 + $0xf8] sm:$0xff]
    %v648 = vld [vmem:[#allocation7 + $0x100] sm:$0xff]
    %v649 = vld [vmem:[#allocation7 + $0x108] sm:$0xff]
    %v650 = vld [vmem:[#allocation7 + $0x110] sm:$0xff]
    %v651 = vld [vmem:[#allocation7 + $0x118] sm:$0xff]
    %v652 = vld [vmem:[#allocation7 + $0x120] sm:$0xff]
    %v653 = vld [vmem:[#allocation7 + $0x128] sm:$0xff]
    %v654 = vld [vmem:[#allocation7 + $0x130] sm:$0xff]
    %v655 = vld [vmem:[#allocation7 + $0x138] sm:$0xff]
    %v656 = vld [vmem:[#allocation7 + $0x140] sm:$0xff]
    %v657 = vld [vmem:[#allocation7 + $0x148] sm:$0xff]
    %v658 = vld [vmem:[#allocation7 + $0x150] sm:$0xff]
    %v659 = vld [vmem:[#allocation7 + $0x158] sm:$0xff]
    %v660 = vld [vmem:[#allocation7 + $0x160] sm:$0xff]
    %v661 = vld [vmem:[#allocation7 + $0x168] sm:$0xff]
    %v662 = vld [vmem:[#allocation7 + $0x170] sm:$0xff]
    %v663 = vld [vmem:[#allocation7 + $0x178] sm:$0xff]
    %v664 = vld [vmem:[#allocation7 + $0x180] sm:$0xff]
    %v665 = vld [vmem:[#allocation7 + $0x188] sm:$0xff]
    %v666 = vld [vmem:[#allocation7 + $0x190] sm:$0xff]
    %v667 = vld [vmem:[#allocation7 + $0x198] sm:$0xff]
    %v668 = vld [vmem:[#allocation7 + $0x1a0] sm:$0xff]
    %v669 = vld [vmem:[#allocation7 + $0x1a8] sm:$0xff]
    %v670 = vld [vmem:[#allocation7 + $0x1b0] sm:$0xff]
    %v671 = vld [vmem:[#allocation7 + $0x1b8] sm:$0xff]
    %v672 = vld [vmem:[#allocation7 + $0x1c0] sm:$0xff]
    %v673 = vld [vmem:[#allocation7 + $0x1c8] sm:$0xff]
    %v674 = vld [vmem:[#allocation7 + $0x1d0] sm:$0xff]
    %v675 = vld [vmem:[#allocation7 + $0x1d8] sm:$0xff]
    %v676 = vld [vmem:[#allocation7 + $0x1e0] sm:$0xff]
    %v677 = vld [vmem:[#allocation7 + $0x1e8] sm:$0xff]
    %v678 = vld [vmem:[#allocation7 + $0x1f0] sm:$0xff]
    %v679 = vld [vmem:[#allocation7 + $0x1f8] sm:$0xff]
    %v680 = vld [vmem:[#allocation7 + $0x200] sm:$0xff]
    %v681 = vld [vmem:[#allocation7 + $0x208] sm:$0xff]
    %v682 = vld [vmem:[#allocation7 + $0x210] sm:$0xff]
    %v683 = vld [vmem:[#allocation7 + $0x218] sm:$0xff]
    %v684 = vld [vmem:[#allocation7 + $0x220] sm:$0xff]
    %v685 = vld [vmem:[#allocation7 + $0x228] sm:$0xff]
    %v686 = vld [vmem:[#allocation7 + $0x230] sm:$0xff]
    %v687 = vld [vmem:[#allocation7 + $0x238] sm:$0xff]
    %v688 = vld [vmem:[#allocation7 + $0x240] sm:$0xff]
    %v689 = vld [vmem:[#allocation7 + $0x248] sm:$0xff]
    %v690 = vld [vmem:[#allocation7 + $0x250] sm:$0xff]
    %v691 = vld [vmem:[#allocation7 + $0x258] sm:$0xff]
    %v692 = vld [vmem:[#allocation7 + $0x260] sm:$0xff]
    %v693 = vld [vmem:[#allocation7 + $0x268] sm:$0xff]
    %v694 = vld [vmem:[#allocation7 + $0x270] sm:$0xff]
    %v695 = vld [vmem:[#allocation7 + $0x278] sm:$0xff]
    %v696 = vld [vmem:[#allocation7 + $0x280] sm:$0xff]
    %v697 = vld [vmem:[#allocation7 + $0x288] sm:$0xff]
    %v698 = vld [vmem:[#allocation7 + $0x290] sm:$0xff]
    %v699 = vld [vmem:[#allocation7 + $0x298] sm:$0xff]
    %v700 = vld [vmem:[#allocation7 + $0x2a0] sm:$0xff]
    %v701 = vld [vmem:[#allocation7 + $0x2a8] sm:$0xff]
    %v702 = vld [vmem:[#allocation7 + $0x2b0] sm:$0xff]
    %v703 = vld [vmem:[#allocation7 + $0x2b8] sm:$0xff]
    %v704 = vld [vmem:[#allocation7 + $0x2c0] sm:$0xff]
    %v705 = vld [vmem:[#allocation7 + $0x2c8] sm:$0xff]
    %v706 = vld [vmem:[#allocation7 + $0x2d0] sm:$0xff]
    %v707 = vld [vmem:[#allocation7 + $0x2d8] sm:$0xff]
    %v708 = vld [vmem:[#allocation7 + $0x2e0] sm:$0xff]
    %v709 = vld [vmem:[#allocation7 + $0x2e8] sm:$0xff]
    %v710 = vld [vmem:[#allocation7 + $0x2f0] sm:$0xff]
    %v711 = vld [vmem:[#allocation7 + $0x2f8] sm:$0xff]
    %v712 = vld [vmem:[#allocation7 + $0x300] sm:$0xff]
    %v713 = vld [vmem:[#allocation7 + $0x308] sm:$0xff]
    %v714 = vld [vmem:[#allocation7 + $0x310] sm:$0xff]
    %v715 = vld [vmem:[#allocation7 + $0x318] sm:$0xff]
    %v716 = vld [vmem:[#allocation7 + $0x320] sm:$0xff]
    %v717 = vld [vmem:[#allocation7 + $0x328] sm:$0xff]
    %v718 = vld [vmem:[#allocation7 + $0x330] sm:$0xff]
    %v719 = vld [vmem:[#allocation7 + $0x338] sm:$0xff]
    %v720 = vld [vmem:[#allocation7 + $0x340] sm:$0xff]
    %v721 = vld [vmem:[#allocation7 + $0x348] sm:$0xff]
    %v722 = vld [vmem:[#allocation7 + $0x350] sm:$0xff]
    %v723 = vld [vmem:[#allocation7 + $0x358] sm:$0xff]
    %v724 = vld [vmem:[#allocation7 + $0x360] sm:$0xff]
    %v725 = vld [vmem:[#allocation7 + $0x368] sm:$0xff]
    %v726 = vld [vmem:[#allocation7 + $0x370] sm:$0xff]
    %v727 = vld [vmem:[#allocation7 + $0x378] sm:$0xff]
    %v728 = vld [vmem:[#allocation7 + $0x380] sm:$0xff]
    %v729 = vld [vmem:[#allocation7 + $0x388] sm:$0xff]
    %v730 = vld [vmem:[#allocation7 + $0x390] sm:$0xff]
    %v731 = vld [vmem:[#allocation7 + $0x398] sm:$0xff]
    %v732 = vld [vmem:[#allocation7 + $0x3a0] sm:$0xff]
    %v733 = vld [vmem:[#allocation7 + $0x3a8] sm:$0xff]
    %v734 = vld [vmem:[#allocation7 + $0x3b0] sm:$0xff]
    %v735 = vld [vmem:[#allocation7 + $0x3b8] sm:$0xff]
    %v736 = vld [vmem:[#allocation7 + $0x3c0] sm:$0xff]
    %v737 = vld [vmem:[#allocation7 + $0x3c8] sm:$0xff]
    %v738 = vld [vmem:[#allocation7 + $0x3d0] sm:$0xff]
    %v739 = vld [vmem:[#allocation7 + $0x3d8] sm:$0xff]
    %v740 = vld [vmem:[#allocation7 + $0x3e0] sm:$0xff]
    %v741 = vld [vmem:[#allocation7 + $0x3e8] sm:$0xff]
    %v742 = vld [vmem:[#allocation7 + $0x3f0] sm:$0xff]
    %v743 = vld [vmem:[#allocation7 + $0x3f8] sm:$0xff]
    %v744 = vld [vmem:[%s8] sm:$0x3]
    %v746 = vlaneseq
    %v747 = vshrl.u32 %v746, 7
    %v748 = vsub.s32 0, %v747
    %v749 = vrot.slane %v744, %v748
    %v750 = vlaneseq
    %v751 = vshrl.u32 %v750, 7
    %v752 = vsub.s32 1, %v751
    %v753 = vrot.slane %v744, %v752
    %756 = vmatprep.subr.mxu0 %v617
    %757 = vmatpush1.msra.mxu0 %v616
    %758 = vmatprep.subr.mxu0 %v619
    %759 = vmatpush1.msra.mxu0 %v618
    %760 = vmatprep.subr.mxu0 %v621
    %761 = vmatpush1.msra.mxu0 %v620
    %762 = vmatprep.subr.mxu0 %v623
    %763 = vmatpush1.msra.mxu0 %v622
    %764 = vmatprep.subr.mxu0 %v625
    %765 = vmatpush1.msra.mxu0 %v624
    %766 = vmatprep.subr.mxu0 %v627
    %767 = vmatpush1.msra.mxu0 %v626
    %768 = vmatprep.subr.mxu0 %v629
    %769 = vmatpush1.msra.mxu0 %v628
    %770 = vmatprep.subr.mxu0 %v631
    %771 = vmatpush1.msra.mxu0 %v630
    %772 = vmatprep.subr.mxu0 %v633
    %773 = vmatpush1.msra.mxu0 %v632
    %774 = vmatprep.subr.mxu0 %v635
    %775 = vmatpush1.msra.mxu0 %v634
    %776 = vmatprep.subr.mxu0 %v637
    %777 = vmatpush1.msra.mxu0 %v636
    %778 = vmatprep.subr.mxu0 %v639
    %779 = vmatpush1.msra.mxu0 %v638
    %780 = vmatprep.subr.mxu0 %v641
    %781 = vmatpush1.msra.mxu0 %v640
    %782 = vmatprep.subr.mxu0 %v643
    %783 = vmatpush1.msra.mxu0 %v642
    %784 = vmatprep.subr.mxu0 %v645
    %785 = vmatpush1.msra.mxu0 %v644
    %786 = vmatprep.subr.mxu0 %v647
    %787 = vmatpush1.msra.mxu0 %v646
    %788 = vmatprep.subr.mxu0 %v649
    %789 = vmatpush1.msra.mxu0 %v648
    %790 = vmatprep.subr.mxu0 %v651
    %791 = vmatpush1.msra.mxu0 %v650
    %792 = vmatprep.subr.mxu0 %v653
    %793 = vmatpush1.msra.mxu0 %v652
    %794 = vmatprep.subr.mxu0 %v655
    %795 = vmatpush1.msra.mxu0 %v654
    %796 = vmatprep.subr.mxu0 %v657
    %797 = vmatpush1.msra.mxu0 %v656
    %798 = vmatprep.subr.mxu0 %v659
    %799 = vmatpush1.msra.mxu0 %v658
    %800 = vmatprep.subr.mxu0 %v661
    %801 = vmatpush1.msra.mxu0 %v660
    %802 = vmatprep.subr.mxu0 %v663
    %803 = vmatpush1.msra.mxu0 %v662
    %804 = vmatprep.subr.mxu0 %v665
    %805 = vmatpush1.msra.mxu0 %v664
    %806 = vmatprep.subr.mxu0 %v667
    %807 = vmatpush1.msra.mxu0 %v666
    %808 = vmatprep.subr.mxu0 %v669
    %809 = vmatpush1.msra.mxu0 %v668
    %810 = vmatprep.subr.mxu0 %v671
    %811 = vmatpush1.msra.mxu0 %v670
    %812 = vmatprep.subr.mxu0 %v673
    %813 = vmatpush1.msra.mxu0 %v672
    %814 = vmatprep.subr.mxu0 %v675
    %815 = vmatpush1.msra.mxu0 %v674
    %816 = vmatprep.subr.mxu0 %v677
    %817 = vmatpush1.msra.mxu0 %v676
    %818 = vmatprep.subr.mxu0 %v679
    %819 = vmatpush1.msra.mxu0 %v678
    %820 = vmatprep.mubr.f32.mxu0 %v609
    %821 = vmatmul.mubr.f32.gmra.mrb[0].mxu0 %v608
    %v822 = vpop.f32.mrb[0].mxu0
    %v823 = vadd.f32 %v749, %v822
    %v824 = vpop.f32.mrb[0].mxu0
    %v825 = vadd.f32 %v753, %v824
    %826 = vmatprep.mubr.f32.mxu0 %v613
    %827 = vmatmul.mubr.f32.gmra.mrb[0].mxu0 %v612
    %v828 = vpop.f32.mrb[0].mxu0
    %v829 = vadd.f32 %v749, %v828
    %v830 = vpop.f32.mrb[0].mxu0
    %v831 = vadd.f32 %v753, %v830
    %832 = vdwg.mxu0
    %833 = vmatprep.subr.mxu0 %v681
    %834 = vmatpush1.msra.mxu0 %v680
    %835 = vmatprep.subr.mxu0 %v683
    %836 = vmatpush1.msra.mxu0 %v682
    %837 = vmatprep.subr.mxu0 %v685
    %838 = vmatpush1.msra.mxu0 %v684
    %839 = vmatprep.subr.mxu0 %v687
    %840 = vmatpush1.msra.mxu0 %v686
    %841 = vmatprep.subr.mxu0 %v689
    %842 = vmatpush1.msra.mxu0 %v688
    %843 = vmatprep.subr.mxu0 %v691
    %844 = vmatpush1.msra.mxu0 %v690
    %845 = vmatprep.subr.mxu0 %v693
    %846 = vmatpush1.msra.mxu0 %v692
    %847 = vmatprep.subr.mxu0 %v695
    %848 = vmatpush1.msra.mxu0 %v694
    %849 = vmatprep.subr.mxu0 %v697
    %850 = vmatpush1.msra.mxu0 %v696
    %851 = vmatprep.subr.mxu0 %v699
    %852 = vmatpush1.msra.mxu0 %v698
    %853 = vmatprep.subr.mxu0 %v701
    %854 = vmatpush1.msra.mxu0 %v700
    %855 = vmatprep.subr.mxu0 %v703
    %856 = vmatpush1.msra.mxu0 %v702
    %857 = vmatprep.subr.mxu0 %v705
    %858 = vmatpush1.msra.mxu0 %v704
    %859 = vmatprep.subr.mxu0 %v707
    %860 = vmatpush1.msra.mxu0 %v706
    %861 = vmatprep.subr.mxu0 %v709
    %862 = vmatpush1.msra.mxu0 %v708
    %863 = vmatprep.subr.mxu0 %v711
    %864 = vmatpush1.msra.mxu0 %v710
    %865 = vmatprep.subr.mxu0 %v713
    %866 = vmatpush1.msra.mxu0 %v712
    %867 = vmatprep.subr.mxu0 %v715
    %868 = vmatpush1.msra.mxu0 %v714
    %869 = vmatprep.subr.mxu0 %v717
    %870 = vmatpush1.msra.mxu0 %v716
    %871 = vmatprep.subr.mxu0 %v719
    %872 = vmatpush1.msra.mxu0 %v718
    %873 = vmatprep.subr.mxu0 %v721
    %874 = vmatpush1.msra.mxu0 %v720
    %875 = vmatprep.subr.mxu0 %v723
    %876 = vmatpush1.msra.mxu0 %v722
    %877 = vmatprep.subr.mxu0 %v725
    %878 = vmatpush1.msra.mxu0 %v724
    %879 = vmatprep.subr.mxu0 %v727
    %880 = vmatpush1.msra.mxu0 %v726
    %881 = vmatprep.subr.mxu0 %v729
    %882 = vmatpush1.msra.mxu0 %v728
    %883 = vmatprep.subr.mxu0 %v731
    %884 = vmatpush1.msra.mxu0 %v730
    %885 = vmatprep.subr.mxu0 %v733
    %886 = vmatpush1.msra.mxu0 %v732
    %887 = vmatprep.subr.mxu0 %v735
    %888 = vmatpush1.msra.mxu0 %v734
    %889 = vmatprep.subr.mxu0 %v737
    %890 = vmatpush1.msra.mxu0 %v736
    %891 = vmatprep.subr.mxu0 %v739
    %892 = vmatpush1.msra.mxu0 %v738
    %893 = vmatprep.subr.mxu0 %v741
    %894 = vmatpush1.msra.mxu0 %v740
    %895 = vmatprep.subr.mxu0 %v743
    %896 = vmatpush1.msra.mxu0 %v742
    %897 = vmatprep.mubr.f32.mxu0 %v611
    %898 = vmatmul.mubr.f32.gmra.mrb[0].mxu0 %v610
    %v899 = vpop.f32.mrb[0].mxu0
    %v900 = vadd.f32 %v823, %v899
    %v901 = vpop.f32.mrb[0].mxu0
    %v902 = vadd.f32 %v825, %v901
    %903 = vmatprep.mubr.f32.mxu0 %v615
    %904 = vmatmul.mubr.f32.gmra.mrb[0].mxu0 %v614
    %v905 = vpop.f32.mrb[0].mxu0
    %v906 = vadd.f32 %v829, %v905
    %v907 = vpop.f32.mrb[0].mxu0
    %v908 = vadd.f32 %v831, %v907
    %909 = vdwg.mxu0
    %v910 = vmax.f32 %v900, 0.0
    %v911 = vmax.f32 %v902, 0.0
    %v912 = vmax.f32 %v906, 0.0
    %v913 = vmax.f32 %v908, 0.0
    %v914 = vld [vmem:[#allocation8] sm:$0xff]
    %v915 = vld [vmem:[#allocation8 + $0x8] sm:$0xff]
    %v916 = vld [vmem:[#allocation8 + $0x10] sm:$0xff]
    %v917 = vld [vmem:[#allocation8 + $0x18] sm:$0xff]
    %v918 = vld [vmem:[#allocation8 + $0x20] sm:$0xff]
    %v919 = vld [vmem:[#allocation8 + $0x28] sm:$0xff]
    %v920 = vld [vmem:[#allocation8 + $0x30] sm:$0xff]
    %v921 = vld [vmem:[#allocation8 + $0x38] sm:$0xff]
    %v922 = vld [vmem:[#allocation8 + $0x40] sm:$0xff]
    %v923 = vld [vmem:[#allocation8 + $0x48] sm:$0xff]
    %v924 = vld [vmem:[#allocation8 + $0x50] sm:$0xff]
    %v925 = vld [vmem:[#allocation8 + $0x58] sm:$0xff]
    %v926 = vld [vmem:[#allocation8 + $0x60] sm:$0xff]
    %v927 = vld [vmem:[#allocation8 + $0x68] sm:$0xff]
    %v928 = vld [vmem:[#allocation8 + $0x70] sm:$0xff]
    %v929 = vld [vmem:[#allocation8 + $0x78] sm:$0xff]
    %v930 = vld [vmem:[#allocation8 + $0x80] sm:$0xff]
    %v931 = vld [vmem:[#allocation8 + $0x88] sm:$0xff]
    %v932 = vld [vmem:[#allocation8 + $0x90] sm:$0xff]
    %v933 = vld [vmem:[#allocation8 + $0x98] sm:$0xff]
    %v934 = vld [vmem:[#allocation8 + $0xa0] sm:$0xff]
    %v935 = vld [vmem:[#allocation8 + $0xa8] sm:$0xff]
    %v936 = vld [vmem:[#allocation8 + $0xb0] sm:$0xff]
    %v937 = vld [vmem:[#allocation8 + $0xb8] sm:$0xff]
    %v938 = vld [vmem:[#allocation8 + $0xc0] sm:$0xff]
    %v939 = vld [vmem:[#allocation8 + $0xc8] sm:$0xff]
    %v940 = vld [vmem:[#allocation8 + $0xd0] sm:$0xff]
    %v941 = vld [vmem:[#allocation8 + $0xd8] sm:$0xff]
    %v942 = vld [vmem:[#allocation8 + $0xe0] sm:$0xff]
    %v943 = vld [vmem:[#allocation8 + $0xe8] sm:$0xff]
    %v944 = vld [vmem:[#allocation8 + $0xf0] sm:$0xff]
    %v945 = vld [vmem:[#allocation8 + $0xf8] sm:$0xff]
    %v946 = vld [vmem:[%s10] sm:$0x1]
    %v948 = vlaneseq
    %v949 = vshrl.u32 %v948, 7
    %v950 = vsub.s32 0, %v949
    %v951 = vrot.slane %v946, %v950
    %953 = vmatprep.subr.mxu0 0.0
    %954 = vmatpush1.msra.mxu0 %v914
    %955 = vmatprep.subr.mxu0 0.0
    %956 = vmatpush1.msra.mxu0 %v915
    %957 = vmatprep.subr.mxu0 0.0
    %958 = vmatpush1.msra.mxu0 %v916
    %959 = vmatprep.subr.mxu0 0.0
    %960 = vmatpush1.msra.mxu0 %v917
    %961 = vmatprep.subr.mxu0 0.0
    %962 = vmatpush1.msra.mxu0 %v918
    %963 = vmatprep.subr.mxu0 0.0
    %964 = vmatpush1.msra.mxu0 %v919
    %965 = vmatprep.subr.mxu0 0.0
    %966 = vmatpush1.msra.mxu0 %v920
    %967 = vmatprep.subr.mxu0 0.0
    %968 = vmatpush1.msra.mxu0 %v921
    %969 = vmatprep.subr.mxu0 0.0
    %970 = vmatpush1.msra.mxu0 %v922
    %971 = vmatprep.subr.mxu0 0.0
    %972 = vmatpush1.msra.mxu0 %v923
    %973 = vmatprep.subr.mxu0 0.0
    %974 = vmatpush1.msra.mxu0 %v924
    %975 = vmatprep.subr.mxu0 0.0
    %976 = vmatpush1.msra.mxu0 %v925
    %977 = vmatprep.subr.mxu0 0.0
    %978 = vmatpush1.msra.mxu0 %v926
    %979 = vmatprep.subr.mxu0 0.0
    %980 = vmatpush1.msra.mxu0 %v927
    %981 = vmatprep.subr.mxu0 0.0
    %982 = vmatpush1.msra.mxu0 %v928
    %983 = vmatprep.subr.mxu0 0.0
    %984 = vmatpush1.msra.mxu0 %v929
    %985 = vmatprep.subr.mxu0 0.0
    %986 = vmatpush1.msra.mxu0 %v930
    %987 = vmatprep.subr.mxu0 0.0
    %988 = vmatpush1.msra.mxu0 %v931
    %989 = vmatprep.subr.mxu0 0.0
    %990 = vmatpush1.msra.mxu0 %v932
    %991 = vmatprep.subr.mxu0 0.0
    %992 = vmatpush1.msra.mxu0 %v933
    %993 = vmatprep.subr.mxu0 0.0
    %994 = vmatpush1.msra.mxu0 %v934
    %995 = vmatprep.subr.mxu0 0.0
    %996 = vmatpush1.msra.mxu0 %v935
    %997 = vmatprep.subr.mxu0 0.0
    %998 = vmatpush1.msra.mxu0 %v936
    %999 = vmatprep.subr.mxu0 0.0
    %1000 = vmatpush1.msra.mxu0 %v937
    %1001 = vmatprep.subr.mxu0 0.0
    %1002 = vmatpush1.msra.mxu0 %v938
    %1003 = vmatprep.subr.mxu0 0.0
    %1004 = vmatpush1.msra.mxu0 %v939
    %1005 = vmatprep.subr.mxu0 0.0
    %1006 = vmatpush1.msra.mxu0 %v940
    %1007 = vmatprep.subr.mxu0 0.0
    %1008 = vmatpush1.msra.mxu0 %v941
    %1009 = vmatprep.subr.mxu0 0.0
    %1010 = vmatpush1.msra.mxu0 %v942
    %1011 = vmatprep.subr.mxu0 0.0
    %1012 = vmatpush1.msra.mxu0 %v943
    %1013 = vmatprep.subr.mxu0 0.0
    %1014 = vmatpush1.msra.mxu0 %v944
    %1015 = vmatprep.subr.mxu0 0.0
    %1016 = vmatpush1.msra.mxu0 %v945
    %1017 = vmatprep.mubr.f32.mxu0 %v911
    %1018 = vmatmul.mubr.f32.gmra.mrb[0].mxu0 %v910
    %v1019 = vpop.f32.mrb[0].mxu0
    %v1020 = vadd.f32 %v951, %v1019
    %v1021 = vpop.f32.mrb[0].mxu0
    %1022 = vmatprep.mubr.f32.mxu0 %v913
    %1023 = vmatmul.mubr.f32.gmra.mrb[0].mxu0 %v912
    %v1024 = vpop.f32.mrb[0].mxu0
    %v1025 = vadd.f32 %v951, %v1024
    %v1026 = vpop.f32.mrb[0].mxu0
    %1027 = vdwg.mxu0
    %v1028 = vtanh.pop %v1020
    %v1029 = vtanh.pop %v1025
    %v1030 = vld [vmem:[%s11] sm:$0x1]
    %v1032 = vlaneseq
    %v1033 = vshrl.u32 %v1032, 7
    %v1034 = vsub.s32 0, %v1033
    %v1035 = vrot.slane %v1030, %v1034
    %v1037 = vmul.f32 %v1028, %v1035
    %v1038 = vmul.f32 %v1029, %v1035
    %1039 = vadd.xlane.f32.xlu0 %v1037
    %v1040 = vpop.xlane.xlu0 %1039
    %1041 = vadd.xlane.f32.xlu0 %v1038
    %v1042 = vpop.xlane.xlu0 %1041
    %v1043 = vld [vmem:[#allocation2] sm:$0x1]
    %v1045 = vlaneseq
    %v1046 = vshrl.u32 %v1045, 7
    %v1047 = vsub.s32 0, %v1046
    %v1048 = vrot.slane %v1043, %v1047
    %v1050 = vadd.f32 %v1040, %v1048
    %v1051 = vadd.f32 %v1042, %v1048
    %vm1052 = vcmask 7168
    %1053 = vst.msk [vmem:[%s13] sm:$0xff] %vm1052, %v1050
    %1054 = vst.msk [vmem:[%s13 + $0x8] sm:$0xff] %vm1052, %v1051
    // Predicated region
    $region70: #{tpu_custom_call.1} parent=1 // pred_check
      _
    $region71: #{tpu_custom_call.1} parent=1 // pred_check_branch
      %1056 = sbr.rel (0) target = $region73
    $region72: #{tpu_custom_call.1} parent=1 // pred_region
      _
    $region73: #{tpu_custom_call.1} parent=1 // pred_fallthru
      _
    // Predicated region
    $region74: #{tpu_custom_call.1} parent=1 // pred_check
      _
    $region75: #{tpu_custom_call.1} parent=1 // pred_check_branch
      %1058 = sbr.rel (0) target = $region77
    $region76: #{tpu_custom_call.1} parent=1 // pred_region
      _
    $region77: #{tpu_custom_call.1} parent=1 // pred_fallthru
      _
    %1059 = vsyncpa [#allocation4], 1
    %1060 = vsyncpa [#allocation6], 1
    %1061 = vsyncpa [#allocation9], 1

</llo_original>
